<compile_context>
chip_gen: v7x
topology: tpu7x:2x2x1
jax: 0.10.0
libtpu: 0.0.40
codegen_flags: <defaults>
</compile_context>

<pallas_src>
import functools

import jax
import jax.numpy as jnp
from jax.experimental import pallas as pl
from jax.experimental.pallas import tpu as pltpu

_BN_EPS = 1e-5
_LANE = 128


def _round_up(n, m):
    return ((n + m - 1) // m) * m


def _mlp_kernel(*refs, num_layers, norm, activation):
    """Fused whole-MLP kernel: refs = (x, [w,b,gamma,beta]*L, out)."""
    x_ref = refs[0]
    o_ref = refs[-1]
    p_refs = refs[1:-1]  # 4 refs per layer

    h = x_ref[...]  # (B, Din_pad) f32
    for i in range(num_layers):
        w_ref, b_ref, g_ref, be_ref = p_refs[4 * i: 4 * i + 4]

        # (dropout is identity at inference)
        # Linear: h @ W + b on a lane-dense padded slab (MXU).
        y = jnp.dot(h, w_ref[...], preferred_element_type=jnp.float32) + b_ref[...]

        if norm:
            # BatchNorm1d with batch statistics (biased variance), folded into
            # one scale/shift FMA.  Single data pass for mean and mean-of-sq.
            inv_b = 1.0 / y.shape[0]
            mean = jnp.sum(y, axis=0, keepdims=True) * inv_b
            mean_sq = jnp.sum(y * y, axis=0, keepdims=True) * inv_b
            var = jnp.maximum(mean_sq - mean * mean, 0.0)
            scale = g_ref[...] * jax.lax.rsqrt(var + _BN_EPS)  # EUP rsqrt
            shift = be_ref[...] - mean * scale
            y = y * scale + shift

        if activation == "ReLU":
            y = jnp.maximum(y, 0.0)
        elif activation == "SELU":
            alpha = 1.6732632423543772848170429916717
            scale_selu = 1.0507009873554804934193349852946
            y = scale_selu * jnp.where(y > 0, y, alpha * (jnp.exp(y) - 1.0))
        else:
            raise NotImplementedError(activation)

        h = y

    o_ref[...] = h.astype(o_ref.dtype)


def init_deepsurv_params(key, dims):
    """Deterministic parameter init mimicking nn.Linear default init shapes."""
    params = []
    for i in range(len(dims) - 1):
        din, dout = dims[i], dims[i + 1]
        key, kw, kb = jax.random.split(key, 3)
        bound = 1.0 / jnp.sqrt(jnp.float32(din))
        # Stored pre-transposed: (din, dout) so the kernel computes x @ W + b.
        w = jax.random.uniform(kw, (din, dout), jnp.float32, -bound, bound)
        b = jax.random.uniform(kb, (1, dout), jnp.float32, -bound, bound)
        gamma = jnp.ones((1, dout), jnp.float32)   # BatchNorm1d weight
        beta = jnp.zeros((1, dout), jnp.float32)   # BatchNorm1d bias
        params.append((w, b, gamma, beta))
    return params


def deepsurv_forward(x, params, config):
    """Forward pass of DeepSurv as one fused Pallas kernel over padded slabs."""
    norm = bool(config["norm"])
    activation = config["activation"]
    num_layers = len(params)

    B, d_in = x.shape
    d_in_p = _round_up(d_in, _LANE)

    # Zero-pad input and per-layer params to 128-lane-dense slabs.  (In a real
    # deployment the params would be pre-padded once, outside the hot path.)
    x_p = jnp.zeros((B, d_in_p), jnp.float32).at[:, :d_in].set(
        x.astype(jnp.float32))

    flat_inputs = [x_p]
    in_specs = [pl.BlockSpec((B, d_in_p), lambda: (0, 0))]
    prev_p = d_in_p
    for (w, b, g, be) in params:
        din, dout = w.shape
        dout_p = _round_up(dout, _LANE)
        w_p = jnp.zeros((prev_p, dout_p), jnp.float32).at[:din, :dout].set(w)
        b_p = jnp.zeros((1, dout_p), jnp.float32).at[:, :dout].set(b)
        g_p = jnp.ones((1, dout_p), jnp.float32).at[:, :dout].set(g)
        be_p = jnp.zeros((1, dout_p), jnp.float32).at[:, :dout].set(be)
        flat_inputs += [w_p, b_p, g_p, be_p]
        in_specs += [
            pl.BlockSpec((prev_p, dout_p), lambda: (0, 0)),
            pl.BlockSpec((1, dout_p), lambda: (0, 0)),
            pl.BlockSpec((1, dout_p), lambda: (0, 0)),
            pl.BlockSpec((1, dout_p), lambda: (0, 0)),
        ]
        prev_p = dout_p

    d_out = params[-1][0].shape[1]
    d_out_p = prev_p

    kernel = functools.partial(
        _mlp_kernel, num_layers=num_layers, norm=norm, activation=activation)

    out_p = pl.pallas_call(
        kernel,
        out_shape=jax.ShapeDtypeStruct((B, d_out_p), jnp.float32),
        in_specs=in_specs,
        out_specs=pl.BlockSpec((B, d_out_p), lambda: (0, 0)),
    )(*flat_inputs)

    # Slice the real feature columns back out of the lane-dense slab.
    return out_p[:, :d_out]


def _reference_forward(x, params, config):
    """Pure-JAX reference for correctness checking."""
    h = x
    for (w, b, g, be) in params:
        y = h @ w + b
        if config["norm"]:
            mean = jnp.mean(y, axis=0, keepdims=True)
            var = jnp.mean((y - mean) ** 2, axis=0, keepdims=True)
            y = (y - mean) * jax.lax.rsqrt(var + _BN_EPS) * g + be
        if config["activation"] == "ReLU":
            y = jnp.maximum(y, 0.0)
        elif config["activation"] == "SELU":
            alpha = 1.6732632423543772848170429916717
            scale_selu = 1.0507009873554804934193349852946
            y = scale_selu * jnp.where(y > 0, y, alpha * (jnp.exp(y) - 1.0))
        h = y
    return h


if __name__ == "__main__":
    config = {
        "drop": 0.5,
        "norm": True,
        "dims": [16, 32, 32, 1],
        "activation": "ReLU",
    }

    key = jax.random.PRNGKey(0)
    key, kx = jax.random.split(key)
    batch = 8
    x = jax.random.normal(kx, (batch, config["dims"][0]), jnp.float32)

    params = init_deepsurv_params(key, config["dims"])

    out = deepsurv_forward(x, params, config)
    out = jax.block_until_ready(out)

    assert out.shape == (batch, config["dims"][-1])
    assert out.dtype == jnp.float32
    assert bool(jnp.all(jnp.isfinite(out)))

    ref = _reference_forward(x, params, config)
    assert jnp.allclose(out, ref, rtol=2e-2, atol=2e-2), (out, ref)

    print("KERNEL_OK")
</pallas_src>

<mosaic_0001>
module attributes {stable_mosaic.version = 11 : i64} {
  func.func @_mlp_kernel(%arg0: memref<8x128xf32, #tpu.memory_space<vmem>>, %arg1: memref<128x128xf32, #tpu.memory_space<vmem>>, %arg2: memref<1x128xf32, #tpu.memory_space<vmem>>, %arg3: memref<1x128xf32, #tpu.memory_space<vmem>>, %arg4: memref<1x128xf32, #tpu.memory_space<vmem>>, %arg5: memref<128x128xf32, #tpu.memory_space<vmem>>, %arg6: memref<1x128xf32, #tpu.memory_space<vmem>>, %arg7: memref<1x128xf32, #tpu.memory_space<vmem>>, %arg8: memref<1x128xf32, #tpu.memory_space<vmem>>, %arg9: memref<128x128xf32, #tpu.memory_space<vmem>>, %arg10: memref<1x128xf32, #tpu.memory_space<vmem>>, %arg11: memref<1x128xf32, #tpu.memory_space<vmem>>, %arg12: memref<1x128xf32, #tpu.memory_space<vmem>>, %arg13: memref<8x128xf32, #tpu.memory_space<vmem>>) attributes {dimension_semantics = [], scalar_prefetch = 0 : i64, scratch_operands = 0 : i64, tpu.core_type = #tpu.core_type<tc>} {
    %c0 = arith.constant 0 : index
    %c0_0 = arith.constant 0 : index
    %0 = vector.load %arg0[%c0, %c0_0] : memref<8x128xf32, #tpu.memory_space<vmem>>, vector<8x128xf32>
    %c0_1 = arith.constant 0 : index
    %c0_2 = arith.constant 0 : index
    %1 = vector.load %arg1[%c0_1, %c0_2] : memref<128x128xf32, #tpu.memory_space<vmem>>, vector<128x128xf32>
    %cst = arith.constant dense<0.000000e+00> : vector<8x128xf32>
    %2 = tpu.matmul %0, %1, %cst {dimension_numbers = #tpu.dot_dimension_numbers<[1], [0], [0], [1], [0, 0, 1, 1], [], []>} : vector<8x128xf32>, vector<128x128xf32>, vector<8x128xf32> -> vector<8x128xf32>
    %c0_3 = arith.constant 0 : index
    %c0_4 = arith.constant 0 : index
    %3 = vector.load %arg2[%c0_3, %c0_4] : memref<1x128xf32, #tpu.memory_space<vmem>>, vector<1x128xf32>
    %4 = vector.broadcast %3 : vector<1x128xf32> to vector<8x128xf32>
    %5 = arith.addf %2, %4 : vector<8x128xf32>
    %cst_5 = arith.constant dense<0.000000e+00> : vector<128xf32>
    %6 = vector.multi_reduction <add>, %5, %cst_5 [0] : vector<8x128xf32> to vector<128xf32>
    %7 = vector.shape_cast %6 : vector<128xf32> to vector<1x128xf32>
    %cst_6 = arith.constant 1.250000e-01 : f32
    %8 = vector.broadcast %cst_6 : f32 to vector<1x128xf32>
    %9 = arith.mulf %7, %8 : vector<1x128xf32>
    %10 = arith.mulf %5, %5 : vector<8x128xf32>
    %cst_7 = arith.constant dense<0.000000e+00> : vector<128xf32>
    %11 = vector.multi_reduction <add>, %10, %cst_7 [0] : vector<8x128xf32> to vector<128xf32>
    %12 = vector.shape_cast %11 : vector<128xf32> to vector<1x128xf32>
    %cst_8 = arith.constant 1.250000e-01 : f32
    %13 = vector.broadcast %cst_8 : f32 to vector<1x128xf32>
    %14 = arith.mulf %12, %13 : vector<1x128xf32>
    %15 = arith.mulf %9, %9 : vector<1x128xf32>
    %16 = arith.subf %14, %15 : vector<1x128xf32>
    %cst_9 = arith.constant 0.000000e+00 : f32
    %17 = vector.broadcast %cst_9 : f32 to vector<1x128xf32>
    %18 = arith.maximumf %16, %17 : vector<1x128xf32>
    %c0_10 = arith.constant 0 : index
    %c0_11 = arith.constant 0 : index
    %19 = vector.load %arg3[%c0_10, %c0_11] : memref<1x128xf32, #tpu.memory_space<vmem>>, vector<1x128xf32>
    %cst_12 = arith.constant 9.99999974E-6 : f32
    %20 = vector.broadcast %cst_12 : f32 to vector<1x128xf32>
    %21 = arith.addf %18, %20 : vector<1x128xf32>
    %22 = math.rsqrt %21 : vector<1x128xf32>
    %23 = arith.mulf %19, %22 : vector<1x128xf32>
    %c0_13 = arith.constant 0 : index
    %c0_14 = arith.constant 0 : index
    %24 = vector.load %arg4[%c0_13, %c0_14] : memref<1x128xf32, #tpu.memory_space<vmem>>, vector<1x128xf32>
    %25 = arith.mulf %9, %23 : vector<1x128xf32>
    %26 = arith.subf %24, %25 : vector<1x128xf32>
    %27 = vector.broadcast %23 : vector<1x128xf32> to vector<8x128xf32>
    %28 = arith.mulf %5, %27 : vector<8x128xf32>
    %29 = vector.broadcast %26 : vector<1x128xf32> to vector<8x128xf32>
    %30 = arith.addf %28, %29 : vector<8x128xf32>
    %cst_15 = arith.constant 0.000000e+00 : f32
    %31 = vector.broadcast %cst_15 : f32 to vector<8x128xf32>
    %32 = arith.maximumf %30, %31 : vector<8x128xf32>
    %c0_16 = arith.constant 0 : index
    %c0_17 = arith.constant 0 : index
    %33 = vector.load %arg5[%c0_16, %c0_17] : memref<128x128xf32, #tpu.memory_space<vmem>>, vector<128x128xf32>
    %cst_18 = arith.constant dense<0.000000e+00> : vector<8x128xf32>
    %34 = tpu.matmul %32, %33, %cst_18 {dimension_numbers = #tpu.dot_dimension_numbers<[1], [0], [0], [1], [0, 0, 1, 1], [], []>} : vector<8x128xf32>, vector<128x128xf32>, vector<8x128xf32> -> vector<8x128xf32>
    %c0_19 = arith.constant 0 : index
    %c0_20 = arith.constant 0 : index
    %35 = vector.load %arg6[%c0_19, %c0_20] : memref<1x128xf32, #tpu.memory_space<vmem>>, vector<1x128xf32>
    %36 = vector.broadcast %35 : vector<1x128xf32> to vector<8x128xf32>
    %37 = arith.addf %34, %36 : vector<8x128xf32>
    %cst_21 = arith.constant dense<0.000000e+00> : vector<128xf32>
    %38 = vector.multi_reduction <add>, %37, %cst_21 [0] : vector<8x128xf32> to vector<128xf32>
    %39 = vector.shape_cast %38 : vector<128xf32> to vector<1x128xf32>
    %cst_22 = arith.constant 1.250000e-01 : f32
    %40 = vector.broadcast %cst_22 : f32 to vector<1x128xf32>
    %41 = arith.mulf %39, %40 : vector<1x128xf32>
    %42 = arith.mulf %37, %37 : vector<8x128xf32>
    %cst_23 = arith.constant dense<0.000000e+00> : vector<128xf32>
    %43 = vector.multi_reduction <add>, %42, %cst_23 [0] : vector<8x128xf32> to vector<128xf32>
    %44 = vector.shape_cast %43 : vector<128xf32> to vector<1x128xf32>
    %cst_24 = arith.constant 1.250000e-01 : f32
    %45 = vector.broadcast %cst_24 : f32 to vector<1x128xf32>
    %46 = arith.mulf %44, %45 : vector<1x128xf32>
    %47 = arith.mulf %41, %41 : vector<1x128xf32>
    %48 = arith.subf %46, %47 : vector<1x128xf32>
    %cst_25 = arith.constant 0.000000e+00 : f32
    %49 = vector.broadcast %cst_25 : f32 to vector<1x128xf32>
    %50 = arith.maximumf %48, %49 : vector<1x128xf32>
    %c0_26 = arith.constant 0 : index
    %c0_27 = arith.constant 0 : index
    %51 = vector.load %arg7[%c0_26, %c0_27] : memref<1x128xf32, #tpu.memory_space<vmem>>, vector<1x128xf32>
    %cst_28 = arith.constant 9.99999974E-6 : f32
    %52 = vector.broadcast %cst_28 : f32 to vector<1x128xf32>
    %53 = arith.addf %50, %52 : vector<1x128xf32>
    %54 = math.rsqrt %53 : vector<1x128xf32>
    %55 = arith.mulf %51, %54 : vector<1x128xf32>
    %c0_29 = arith.constant 0 : index
    %c0_30 = arith.constant 0 : index
    %56 = vector.load %arg8[%c0_29, %c0_30] : memref<1x128xf32, #tpu.memory_space<vmem>>, vector<1x128xf32>
    %57 = arith.mulf %41, %55 : vector<1x128xf32>
    %58 = arith.subf %56, %57 : vector<1x128xf32>
    %59 = vector.broadcast %55 : vector<1x128xf32> to vector<8x128xf32>
    %60 = arith.mulf %37, %59 : vector<8x128xf32>
    %61 = vector.broadcast %58 : vector<1x128xf32> to vector<8x128xf32>
    %62 = arith.addf %60, %61 : vector<8x128xf32>
    %cst_31 = arith.constant 0.000000e+00 : f32
    %63 = vector.broadcast %cst_31 : f32 to vector<8x128xf32>
    %64 = arith.maximumf %62, %63 : vector<8x128xf32>
    %c0_32 = arith.constant 0 : index
    %c0_33 = arith.constant 0 : index
    %65 = vector.load %arg9[%c0_32, %c0_33] : memref<128x128xf32, #tpu.memory_space<vmem>>, vector<128x128xf32>
    %cst_34 = arith.constant dense<0.000000e+00> : vector<8x128xf32>
    %66 = tpu.matmul %64, %65, %cst_34 {dimension_numbers = #tpu.dot_dimension_numbers<[1], [0], [0], [1], [0, 0, 1, 1], [], []>} : vector<8x128xf32>, vector<128x128xf32>, vector<8x128xf32> -> vector<8x128xf32>
    %c0_35 = arith.constant 0 : index
    %c0_36 = arith.constant 0 : index
    %67 = vector.load %arg10[%c0_35, %c0_36] : memref<1x128xf32, #tpu.memory_space<vmem>>, vector<1x128xf32>
    %68 = vector.broadcast %67 : vector<1x128xf32> to vector<8x128xf32>
    %69 = arith.addf %66, %68 : vector<8x128xf32>
    %cst_37 = arith.constant dense<0.000000e+00> : vector<128xf32>
    %70 = vector.multi_reduction <add>, %69, %cst_37 [0] : vector<8x128xf32> to vector<128xf32>
    %71 = vector.shape_cast %70 : vector<128xf32> to vector<1x128xf32>
    %cst_38 = arith.constant 1.250000e-01 : f32
    %72 = vector.broadcast %cst_38 : f32 to vector<1x128xf32>
    %73 = arith.mulf %71, %72 : vector<1x128xf32>
    %74 = arith.mulf %69, %69 : vector<8x128xf32>
    %cst_39 = arith.constant dense<0.000000e+00> : vector<128xf32>
    %75 = vector.multi_reduction <add>, %74, %cst_39 [0] : vector<8x128xf32> to vector<128xf32>
    %76 = vector.shape_cast %75 : vector<128xf32> to vector<1x128xf32>
    %cst_40 = arith.constant 1.250000e-01 : f32
    %77 = vector.broadcast %cst_40 : f32 to vector<1x128xf32>
    %78 = arith.mulf %76, %77 : vector<1x128xf32>
    %79 = arith.mulf %73, %73 : vector<1x128xf32>
    %80 = arith.subf %78, %79 : vector<1x128xf32>
    %cst_41 = arith.constant 0.000000e+00 : f32
    %81 = vector.broadcast %cst_41 : f32 to vector<1x128xf32>
    %82 = arith.maximumf %80, %81 : vector<1x128xf32>
    %c0_42 = arith.constant 0 : index
    %c0_43 = arith.constant 0 : index
    %83 = vector.load %arg11[%c0_42, %c0_43] : memref<1x128xf32, #tpu.memory_space<vmem>>, vector<1x128xf32>
    %cst_44 = arith.constant 9.99999974E-6 : f32
    %84 = vector.broadcast %cst_44 : f32 to vector<1x128xf32>
    %85 = arith.addf %82, %84 : vector<1x128xf32>
    %86 = math.rsqrt %85 : vector<1x128xf32>
    %87 = arith.mulf %83, %86 : vector<1x128xf32>
    %c0_45 = arith.constant 0 : index
    %c0_46 = arith.constant 0 : index
    %88 = vector.load %arg12[%c0_45, %c0_46] : memref<1x128xf32, #tpu.memory_space<vmem>>, vector<1x128xf32>
    %89 = arith.mulf %73, %87 : vector<1x128xf32>
    %90 = arith.subf %88, %89 : vector<1x128xf32>
    %91 = vector.broadcast %87 : vector<1x128xf32> to vector<8x128xf32>
    %92 = arith.mulf %69, %91 : vector<8x128xf32>
    %93 = vector.broadcast %90 : vector<1x128xf32> to vector<8x128xf32>
    %94 = arith.addf %92, %93 : vector<8x128xf32>
    %cst_47 = arith.constant 0.000000e+00 : f32
    %95 = vector.broadcast %cst_47 : f32 to vector<8x128xf32>
    %96 = arith.maximumf %94, %95 : vector<8x128xf32>
    %c0_48 = arith.constant 0 : index
    %c0_49 = arith.constant 0 : index
    %97 = vector.load %arg13[%c0_48, %c0_49] : memref<8x128xf32, #tpu.memory_space<vmem>>, vector<8x128xf32>
    tpu.vector_store %arg13[%c0_48, %c0_49], %96 {strides = array<i32>} : memref<8x128xf32, #tpu.memory_space<vmem>>, vector<8x128xf32>,
    return
  }
}

</mosaic_0001>

<llo_original>
// kernel: tpu_custom_call.1
$region0: #{tpu_custom_call.1}
  #allocation0 [shape = 'u32[]', space=smem, size = 0x4, offset = 0x4, fixed_abs, tag = 'smem constant byte address 0x4 - core index']
  #allocation1 [shape = 'u32[144,128]{1,0:T(1,128)}', space=vmem, size = 0x12000, scoped, tag = 'internal scratch']
  %s0 = inlined_call_operand.hbm [shape: f32[8,128], index: 0, kind: input, shape index: {}]
  %s1 = inlined_call_operand.hbm [shape: f32[128,128], index: 1, kind: input, shape index: {}]
  %s2 = inlined_call_operand.vmem [shape: f32[1,128], index: 2, kind: input, shape index: {}]
  %s3 = inlined_call_operand.vmem [shape: f32[1,128], index: 3, kind: input, shape index: {}]
  %s4 = inlined_call_operand.vmem [shape: f32[1,128], index: 4, kind: input, shape index: {}]
  %s5 = inlined_call_operand.hbm [shape: f32[128,128], index: 5, kind: input, shape index: {}]
  %s6 = inlined_call_operand.vmem [shape: f32[1,128], index: 6, kind: input, shape index: {}]
  %s7 = inlined_call_operand.vmem [shape: f32[1,128], index: 7, kind: input, shape index: {}]
  %s8 = inlined_call_operand.vmem [shape: f32[1,128], index: 8, kind: input, shape index: {}]
  %s9 = inlined_call_operand.hbm [shape: f32[128,128], index: 9, kind: input, shape index: {}]
  %s10 = inlined_call_operand.vmem [shape: f32[1,128], index: 10, kind: input, shape index: {}]
  %s11 = inlined_call_operand.vmem [shape: f32[1,128], index: 11, kind: input, shape index: {}]
  %s12 = inlined_call_operand.vmem [shape: f32[1,128], index: 12, kind: input, shape index: {}]
  %s13 = inlined_call_operand.hbm [shape: f32[8,128], index: 13, kind: output, shape index: {}]
  %s14 = sld [smem:[#allocation0]]
  $region78: #{tpu_custom_call.1} parent=0
    _
  %s16 = ssub.s32 1, %s14
  %s17 = scalar_select 0, %s16, %s14
  $region1: #{tpu_custom_call.1} parent=0
    #allocation2 [shape = 'u8[4096]{0}', space=vmem, size = 0x1000, scoped, tag = 'input window, operand 0, single buffered']
    #allocation3 [shape = 's32[1]{0}', space=sflag, size = 0x4, scoped, tag = 'scoped memory for tpu_custom_call.1']
    #allocation4 [shape = 's32[1]{0}', space=sflag, size = 0x4, scoped, tag = 'scoped memory for tpu_custom_call.1']
    #allocation5 [shape = 'u8[65536]{0}', space=vmem, size = 0x10000, scoped, tag = 'input window, operand 1, single buffered']
    #allocation6 [shape = 's32[1]{0}', space=sflag, size = 0x4, scoped, tag = 'scoped memory for tpu_custom_call.1']
    #allocation7 [shape = 'u8[65536]{0}', space=vmem, size = 0x10000, scoped, tag = 'input window, operand 5, single buffered']
    #allocation8 [shape = 'u8[65536]{0}', space=vmem, size = 0x10000, scoped, tag = 'input window, operand 9, single buffered']
    #allocation9 [shape = 's32[1]{0}', space=sflag, size = 0x4, scoped, tag = 'scoped memory for tpu_custom_call.1']
    #allocation10 [shape = 'u8[4096]{0}', space=vmem, size = 0x1000, scoped, tag = 'output window, operand 0, single buffered']
    %18 = vsyncpa [#allocation3], 0
    %19 = vsyncpa [#allocation6], 0
    %20 = vsyncpa [#allocation9], 0
    %21 = vsyncpa [#allocation4], 0
    // Predicated region
    $region2: #{tpu_custom_call.1} parent=1 // pred_check
      _
    $region3: #{tpu_custom_call.1} parent=1 // pred_check_branch
      %23 = sbr.rel (0) target = $region5
    $region4: #{tpu_custom_call.1} parent=1 // pred_region
      %s25 = ssub.s32 128, 128
      %26 = vsyncadd [#allocation3], %s25
      %s28 = sshll.u32 [#allocation2], 4
      %s29 = int_to_ptr.vmem [resolvable:$true] %s28
      %31 = dma.hbm_to_vmem [thread:$0]  %s0, 128, %s29, [#allocation3]
    $region5: #{tpu_custom_call.1} parent=1 // pred_fallthru
      _
    // Predicated region
    $region6: #{tpu_custom_call.1} parent=1 // pred_check
      _
    $region7: #{tpu_custom_call.1} parent=1 // pred_check_branch
      %33 = sbr.rel (0) target = $region9
    $region8: #{tpu_custom_call.1} parent=1 // pred_region
      %s35 = ssub.s32 2048, 2048
      %36 = vsyncadd [#allocation6], %s35
      %s37 = sshll.u32 [#allocation5], 4
      %s38 = int_to_ptr.vmem [resolvable:$true] %s37
      %43 = dma.hbm_to_vmem [thread:$0]  %s1, 2048, %s38, [#allocation6], 128, 128, 8
    $region9: #{tpu_custom_call.1} parent=1 // pred_fallthru
      _
    // Predicated region
    $region10: #{tpu_custom_call.1} parent=1 // pred_check
      _
    $region11: #{tpu_custom_call.1} parent=1 // pred_check_branch
      %45 = sbr.rel (0) target = $region13
    $region12: #{tpu_custom_call.1} parent=1 // pred_region
      _
    $region13: #{tpu_custom_call.1} parent=1 // pred_fallthru
      _
    // Predicated region
    $region14: #{tpu_custom_call.1} parent=1 // pred_check
      _
    $region15: #{tpu_custom_call.1} parent=1 // pred_check_branch
      %47 = sbr.rel (0) target = $region17
    $region16: #{tpu_custom_call.1} parent=1 // pred_region
      _
    $region17: #{tpu_custom_call.1} parent=1 // pred_fallthru
      _
    // Predicated region
    $region18: #{tpu_custom_call.1} parent=1 // pred_check
      _
    $region19: #{tpu_custom_call.1} parent=1 // pred_check_branch
      %49 = sbr.rel (0) target = $region21
    $region20: #{tpu_custom_call.1} parent=1 // pred_region
      _
    $region21: #{tpu_custom_call.1} parent=1 // pred_fallthru
      _
    // Predicated region
    $region22: #{tpu_custom_call.1} parent=1 // pred_check
      _
    $region23: #{tpu_custom_call.1} parent=1 // pred_check_branch
      %51 = sbr.rel (0) target = $region25
    $region24: #{tpu_custom_call.1} parent=1 // pred_region
      %s53 = ssub.s32 2048, 2048
      %54 = vsyncadd [#allocation6], %s53
      %s55 = sshll.u32 [#allocation7], 4
      %s56 = int_to_ptr.vmem [resolvable:$true] %s55
      %61 = dma.hbm_to_vmem [thread:$0]  %s5, 2048, %s56, [#allocation6], 128, 128, 8
    $region25: #{tpu_custom_call.1} parent=1 // pred_fallthru
      _
    // Predicated region
    $region26: #{tpu_custom_call.1} parent=1 // pred_check
      _
    $region27: #{tpu_custom_call.1} parent=1 // pred_check_branch
      %63 = sbr.rel (0) target = $region29
    $region28: #{tpu_custom_call.1} parent=1 // pred_region
      _
    $region29: #{tpu_custom_call.1} parent=1 // pred_fallthru
      _
    // Predicated region
    $region30: #{tpu_custom_call.1} parent=1 // pred_check
      _
    $region31: #{tpu_custom_call.1} parent=1 // pred_check_branch
      %65 = sbr.rel (0) target = $region33
    $region32: #{tpu_custom_call.1} parent=1 // pred_region
      _
    $region33: #{tpu_custom_call.1} parent=1 // pred_fallthru
      _
    // Predicated region
    $region34: #{tpu_custom_call.1} parent=1 // pred_check
      _
    $region35: #{tpu_custom_call.1} parent=1 // pred_check_branch
      %67 = sbr.rel (0) target = $region37
    $region36: #{tpu_custom_call.1} parent=1 // pred_region
      _
    $region37: #{tpu_custom_call.1} parent=1 // pred_fallthru
      _
    // Predicated region
    $region38: #{tpu_custom_call.1} parent=1 // pred_check
      _
    $region39: #{tpu_custom_call.1} parent=1 // pred_check_branch
      %69 = sbr.rel (0) target = $region41
    $region40: #{tpu_custom_call.1} parent=1 // pred_region
      %s71 = ssub.s32 2048, 2048
      %72 = vsyncadd [#allocation9], %s71
      %s73 = sshll.u32 [#allocation8], 4
      %s74 = int_to_ptr.vmem [resolvable:$true] %s73
      %79 = dma.hbm_to_vmem [thread:$0]  %s9, 2048, %s74, [#allocation9], 128, 128, 8
    $region41: #{tpu_custom_call.1} parent=1 // pred_fallthru
      _
    // Predicated region
    $region42: #{tpu_custom_call.1} parent=1 // pred_check
      _
    $region43: #{tpu_custom_call.1} parent=1 // pred_check_branch
      %81 = sbr.rel (0) target = $region45
    $region44: #{tpu_custom_call.1} parent=1 // pred_region
      _
    $region45: #{tpu_custom_call.1} parent=1 // pred_fallthru
      _
    // Predicated region
    $region46: #{tpu_custom_call.1} parent=1 // pred_check
      _
    $region47: #{tpu_custom_call.1} parent=1 // pred_check_branch
      %83 = sbr.rel (0) target = $region49
    $region48: #{tpu_custom_call.1} parent=1 // pred_region
      _
    $region49: #{tpu_custom_call.1} parent=1 // pred_fallthru
      _
    // Predicated region
    $region50: #{tpu_custom_call.1} parent=1 // pred_check
      _
    $region51: #{tpu_custom_call.1} parent=1 // pred_check_branch
      %85 = sbr.rel (0) target = $region53
    $region52: #{tpu_custom_call.1} parent=1 // pred_region
      _
    $region53: #{tpu_custom_call.1} parent=1 // pred_fallthru
      _
    // Predicated region
    $region54: #{tpu_custom_call.1} parent=1 // pred_check
      _
    $region55: #{tpu_custom_call.1} parent=1 // pred_check_branch
      %87 = sbr.rel (0) target = $region57
    $region56: #{tpu_custom_call.1} parent=1 // pred_region
      %88 = dma.done [#allocation3], 128
    $region57: #{tpu_custom_call.1} parent=1 // pred_fallthru
      _
    // Predicated region
    $region58: #{tpu_custom_call.1} parent=1 // pred_check
      _
    $region59: #{tpu_custom_call.1} parent=1 // pred_check_branch
      %90 = sbr.rel (0) target = $region61
    $region60: #{tpu_custom_call.1} parent=1 // pred_region
      %91 = dma.done [#allocation6], 2048
    $region61: #{tpu_custom_call.1} parent=1 // pred_fallthru
      _
    // Predicated region
    $region62: #{tpu_custom_call.1} parent=1 // pred_check
      _
    $region63: #{tpu_custom_call.1} parent=1 // pred_check_branch
      %93 = sbr.rel (0) target = $region65
    $region64: #{tpu_custom_call.1} parent=1 // pred_region
      %94 = dma.done [#allocation6], 2048
    $region65: #{tpu_custom_call.1} parent=1 // pred_fallthru
      _
    // Predicated region
    $region66: #{tpu_custom_call.1} parent=1 // pred_check
      _
    $region67: #{tpu_custom_call.1} parent=1 // pred_check_branch
      %96 = sbr.rel (0) target = $region69
    $region68: #{tpu_custom_call.1} parent=1 // pred_region
      %97 = dma.done [#allocation9], 2048
    $region69: #{tpu_custom_call.1} parent=1 // pred_fallthru
      _
    %v98 = vld [vmem:[#allocation2] sm:$0xff]
    %v99 = vld [vmem:[#allocation5] sm:$0xff]
    %v100 = vld [vmem:[#allocation5 + $0x8] sm:$0xff]
    %v101 = vld [vmem:[#allocation5 + $0x10] sm:$0xff]
    %v102 = vld [vmem:[#allocation5 + $0x18] sm:$0xff]
    %v103 = vld [vmem:[#allocation5 + $0x20] sm:$0xff]
    %v104 = vld [vmem:[#allocation5 + $0x28] sm:$0xff]
    %v105 = vld [vmem:[#allocation5 + $0x30] sm:$0xff]
    %v106 = vld [vmem:[#allocation5 + $0x38] sm:$0xff]
    %v107 = vld [vmem:[#allocation5 + $0x40] sm:$0xff]
    %v108 = vld [vmem:[#allocation5 + $0x48] sm:$0xff]
    %v109 = vld [vmem:[#allocation5 + $0x50] sm:$0xff]
    %v110 = vld [vmem:[#allocation5 + $0x58] sm:$0xff]
    %v111 = vld [vmem:[#allocation5 + $0x60] sm:$0xff]
    %v112 = vld [vmem:[#allocation5 + $0x68] sm:$0xff]
    %v113 = vld [vmem:[#allocation5 + $0x70] sm:$0xff]
    %v114 = vld [vmem:[#allocation5 + $0x78] sm:$0xff]
    %v115 = vld [vmem:[%s2] sm:$0x1]
    %v117 = vlaneseq
    %v118 = vshrl.u32 %v117, 7
    %v119 = vsub.s32 0, %v118
    %v120 = vrot.slane %v115, %v119
    %122 = vmatprep.subr.mxu0 0.0
    %123 = vmatpush1.msra.mxu0 %v99
    %124 = vmatprep.subr.mxu0 0.0
    %125 = vmatpush1.msra.mxu0 %v100
    %126 = vmatprep.subr.mxu0 0.0
    %127 = vmatpush1.msra.mxu0 %v101
    %128 = vmatprep.subr.mxu0 0.0
    %129 = vmatpush1.msra.mxu0 %v102
    %130 = vmatprep.subr.mxu0 0.0
    %131 = vmatpush1.msra.mxu0 %v103
    %132 = vmatprep.subr.mxu0 0.0
    %133 = vmatpush1.msra.mxu0 %v104
    %134 = vmatprep.subr.mxu0 0.0
    %135 = vmatpush1.msra.mxu0 %v105
    %136 = vmatprep.subr.mxu0 0.0
    %137 = vmatpush1.msra.mxu0 %v106
    %138 = vmatprep.subr.mxu0 0.0
    %139 = vmatpush1.msra.mxu0 %v107
    %140 = vmatprep.subr.mxu0 0.0
    %141 = vmatpush1.msra.mxu0 %v108
    %142 = vmatprep.subr.mxu0 0.0
    %143 = vmatpush1.msra.mxu0 %v109
    %144 = vmatprep.subr.mxu0 0.0
    %145 = vmatpush1.msra.mxu0 %v110
    %146 = vmatprep.subr.mxu0 0.0
    %147 = vmatpush1.msra.mxu0 %v111
    %148 = vmatprep.subr.mxu0 0.0
    %149 = vmatpush1.msra.mxu0 %v112
    %150 = vmatprep.subr.mxu0 0.0
    %151 = vmatpush1.msra.mxu0 %v113
    %152 = vmatprep.subr.mxu0 0.0
    %153 = vmatpush1.msra.mxu0 %v114
    %154 = vmatprep.subr.mxu0 0.0
    %155 = vmatpush1.msra.mxu0 0.0
    %156 = vmatprep.subr.mxu0 0.0
    %157 = vmatpush1.msra.mxu0 0.0
    %158 = vmatprep.subr.mxu0 0.0
    %159 = vmatpush1.msra.mxu0 0.0
    %160 = vmatprep.subr.mxu0 0.0
    %161 = vmatpush1.msra.mxu0 0.0
    %162 = vmatprep.subr.mxu0 0.0
    %163 = vmatpush1.msra.mxu0 0.0
    %164 = vmatprep.subr.mxu0 0.0
    %165 = vmatpush1.msra.mxu0 0.0
    %166 = vmatprep.subr.mxu0 0.0
    %167 = vmatpush1.msra.mxu0 0.0
    %168 = vmatprep.subr.mxu0 0.0
    %169 = vmatpush1.msra.mxu0 0.0
    %170 = vmatprep.subr.mxu0 0.0
    %171 = vmatpush1.msra.mxu0 0.0
    %172 = vmatprep.subr.mxu0 0.0
    %173 = vmatpush1.msra.mxu0 0.0
    %174 = vmatprep.subr.mxu0 0.0
    %175 = vmatpush1.msra.mxu0 0.0
    %176 = vmatprep.subr.mxu0 0.0
    %177 = vmatpush1.msra.mxu0 0.0
    %178 = vmatprep.subr.mxu0 0.0
    %179 = vmatpush1.msra.mxu0 0.0
    %180 = vmatprep.subr.mxu0 0.0
    %181 = vmatpush1.msra.mxu0 0.0
    %182 = vmatprep.subr.mxu0 0.0
    %183 = vmatpush1.msra.mxu0 0.0
    %184 = vmatprep.subr.mxu0 0.0
    %185 = vmatpush1.msra.mxu0 0.0
    %186 = vmatprep.mubr.f32.mxu0 0.0
    %187 = vmatmul.mubr.f32.gmra.mrb[0].mxu0 %v98
    %v188 = vpop.f32.mrb[0].mxu0
    %v189 = vadd.f32 %v120, %v188
    %v190 = vpop.f32.mrb[0].mxu0
    %191 = vdwg.mxu0
    %v192 = vrot.slane %v189, 4
    %v193 = vadd.f32 %v189, %v192
    %v194 = vrot.slane %v193, 2
    %v195 = vadd.f32 %v193, %v194
    %v196 = vrot.slane %v195, 1
    %v197 = vadd.f32 %v195, %v196
    %v198 = vmul.f32 %v197, 0.125
    %v199 = vmul.f32 %v189, %v189
    %v200 = vrot.slane %v199, 4
    %v201 = vadd.f32 %v199, %v200
    %v202 = vrot.slane %v201, 2
    %v203 = vadd.f32 %v201, %v202
    %v204 = vrot.slane %v203, 1
    %v205 = vadd.f32 %v203, %v204
    %v206 = vmul.f32 %v205, 0.125
    %v207 = vmul.f32 %v198, %v198
    %v208 = vsub.f32 %v206, %v207
    %v209 = vmax.f32 %v208, 0.0
    %v210 = vld [vmem:[%s3] sm:$0x1]
    %v211 = vadd.f32 %v209, 1e-05
    %v212 = vrsqrt.pop %v211
    %v213 = vmul.f32 %v210, %v212
    %v214 = vld [vmem:[%s4] sm:$0x1]
    %v215 = vmul.f32 %v198, %v213
    %v216 = vsub.f32 %v214, %v215
    %v218 = vlaneseq
    %v219 = vshrl.u32 %v218, 7
    %v220 = vsub.s32 0, %v219
    %v221 = vrot.slane %v213, %v220
    %v223 = vmul.f32 %v189, %v221
    %v225 = vlaneseq
    %v226 = vshrl.u32 %v225, 7
    %v227 = vsub.s32 0, %v226
    %v228 = vrot.slane %v216, %v227
    %v230 = vadd.f32 %v223, %v228
    %v231 = vmax.f32 %v230, 0.0
    %v232 = vld [vmem:[#allocation7] sm:$0xff]
    %v233 = vld [vmem:[#allocation7 + $0x8] sm:$0xff]
    %v234 = vld [vmem:[#allocation7 + $0x10] sm:$0xff]
    %v235 = vld [vmem:[#allocation7 + $0x18] sm:$0xff]
    %v236 = vld [vmem:[#allocation7 + $0x20] sm:$0xff]
    %v237 = vld [vmem:[#allocation7 + $0x28] sm:$0xff]
    %v238 = vld [vmem:[#allocation7 + $0x30] sm:$0xff]
    %v239 = vld [vmem:[#allocation7 + $0x38] sm:$0xff]
    %v240 = vld [vmem:[#allocation7 + $0x40] sm:$0xff]
    %v241 = vld [vmem:[#allocation7 + $0x48] sm:$0xff]
    %v242 = vld [vmem:[#allocation7 + $0x50] sm:$0xff]
    %v243 = vld [vmem:[#allocation7 + $0x58] sm:$0xff]
    %v244 = vld [vmem:[#allocation7 + $0x60] sm:$0xff]
    %v245 = vld [vmem:[#allocation7 + $0x68] sm:$0xff]
    %v246 = vld [vmem:[#allocation7 + $0x70] sm:$0xff]
    %v247 = vld [vmem:[#allocation7 + $0x78] sm:$0xff]
    %v248 = vld [vmem:[%s6] sm:$0x1]
    %v250 = vlaneseq
    %v251 = vshrl.u32 %v250, 7
    %v252 = vsub.s32 0, %v251
    %v253 = vrot.slane %v248, %v252
    %255 = vmatprep.subr.mxu0 0.0
    %256 = vmatpush1.msra.mxu0 %v232
    %257 = vmatprep.subr.mxu0 0.0
    %258 = vmatpush1.msra.mxu0 %v233
    %259 = vmatprep.subr.mxu0 0.0
    %260 = vmatpush1.msra.mxu0 %v234
    %261 = vmatprep.subr.mxu0 0.0
    %262 = vmatpush1.msra.mxu0 %v235
    %263 = vmatprep.subr.mxu0 0.0
    %264 = vmatpush1.msra.mxu0 %v236
    %265 = vmatprep.subr.mxu0 0.0
    %266 = vmatpush1.msra.mxu0 %v237
    %267 = vmatprep.subr.mxu0 0.0
    %268 = vmatpush1.msra.mxu0 %v238
    %269 = vmatprep.subr.mxu0 0.0
    %270 = vmatpush1.msra.mxu0 %v239
    %271 = vmatprep.subr.mxu0 0.0
    %272 = vmatpush1.msra.mxu0 %v240
    %273 = vmatprep.subr.mxu0 0.0
    %274 = vmatpush1.msra.mxu0 %v241
    %275 = vmatprep.subr.mxu0 0.0
    %276 = vmatpush1.msra.mxu0 %v242
    %277 = vmatprep.subr.mxu0 0.0
    %278 = vmatpush1.msra.mxu0 %v243
    %279 = vmatprep.subr.mxu0 0.0
    %280 = vmatpush1.msra.mxu0 %v244
    %281 = vmatprep.subr.mxu0 0.0
    %282 = vmatpush1.msra.mxu0 %v245
    %283 = vmatprep.subr.mxu0 0.0
    %284 = vmatpush1.msra.mxu0 %v246
    %285 = vmatprep.subr.mxu0 0.0
    %286 = vmatpush1.msra.mxu0 %v247
    %287 = vmatprep.subr.mxu0 0.0
    %288 = vmatpush1.msra.mxu0 0.0
    %289 = vmatprep.subr.mxu0 0.0
    %290 = vmatpush1.msra.mxu0 0.0
    %291 = vmatprep.subr.mxu0 0.0
    %292 = vmatpush1.msra.mxu0 0.0
    %293 = vmatprep.subr.mxu0 0.0
    %294 = vmatpush1.msra.mxu0 0.0
    %295 = vmatprep.subr.mxu0 0.0
    %296 = vmatpush1.msra.mxu0 0.0
    %297 = vmatprep.subr.mxu0 0.0
    %298 = vmatpush1.msra.mxu0 0.0
    %299 = vmatprep.subr.mxu0 0.0
    %300 = vmatpush1.msra.mxu0 0.0
    %301 = vmatprep.subr.mxu0 0.0
    %302 = vmatpush1.msra.mxu0 0.0
    %303 = vmatprep.subr.mxu0 0.0
    %304 = vmatpush1.msra.mxu0 0.0
    %305 = vmatprep.subr.mxu0 0.0
    %306 = vmatpush1.msra.mxu0 0.0
    %307 = vmatprep.subr.mxu0 0.0
    %308 = vmatpush1.msra.mxu0 0.0
    %309 = vmatprep.subr.mxu0 0.0
    %310 = vmatpush1.msra.mxu0 0.0
    %311 = vmatprep.subr.mxu0 0.0
    %312 = vmatpush1.msra.mxu0 0.0
    %313 = vmatprep.subr.mxu0 0.0
    %314 = vmatpush1.msra.mxu0 0.0
    %315 = vmatprep.subr.mxu0 0.0
    %316 = vmatpush1.msra.mxu0 0.0
    %317 = vmatprep.subr.mxu0 0.0
    %318 = vmatpush1.msra.mxu0 0.0
    %319 = vmatprep.mubr.f32.mxu0 0.0
    %320 = vmatmul.mubr.f32.gmra.mrb[0].mxu0 %v231
    %v321 = vpop.f32.mrb[0].mxu0
    %v322 = vadd.f32 %v253, %v321
    %v323 = vpop.f32.mrb[0].mxu0
    %324 = vdwg.mxu0
    %v325 = vrot.slane %v322, 4
    %v326 = vadd.f32 %v322, %v325
    %v327 = vrot.slane %v326, 2
    %v328 = vadd.f32 %v326, %v327
    %v329 = vrot.slane %v328, 1
    %v330 = vadd.f32 %v328, %v329
    %v331 = vmul.f32 %v330, 0.125
    %v332 = vmul.f32 %v322, %v322
    %v333 = vrot.slane %v332, 4
    %v334 = vadd.f32 %v332, %v333
    %v335 = vrot.slane %v334, 2
    %v336 = vadd.f32 %v334, %v335
    %v337 = vrot.slane %v336, 1
    %v338 = vadd.f32 %v336, %v337
    %v339 = vmul.f32 %v338, 0.125
    %v340 = vmul.f32 %v331, %v331
    %v341 = vsub.f32 %v339, %v340
    %v342 = vmax.f32 %v341, 0.0
    %v343 = vld [vmem:[%s7] sm:$0x1]
    %v344 = vadd.f32 %v342, 1e-05
    %v345 = vrsqrt.pop %v344
    %v346 = vmul.f32 %v343, %v345
    %v347 = vld [vmem:[%s8] sm:$0x1]
    %v348 = vmul.f32 %v331, %v346
    %v349 = vsub.f32 %v347, %v348
    %v351 = vlaneseq
    %v352 = vshrl.u32 %v351, 7
    %v353 = vsub.s32 0, %v352
    %v354 = vrot.slane %v346, %v353
    %v356 = vmul.f32 %v322, %v354
    %v358 = vlaneseq
    %v359 = vshrl.u32 %v358, 7
    %v360 = vsub.s32 0, %v359
    %v361 = vrot.slane %v349, %v360
    %v363 = vadd.f32 %v356, %v361
    %v364 = vmax.f32 %v363, 0.0
    %v365 = vld [vmem:[#allocation8] sm:$0xff]
    %v366 = vld [vmem:[#allocation8 + $0x8] sm:$0xff]
    %v367 = vld [vmem:[#allocation8 + $0x10] sm:$0xff]
    %v368 = vld [vmem:[#allocation8 + $0x18] sm:$0xff]
    %v369 = vld [vmem:[#allocation8 + $0x20] sm:$0xff]
    %v370 = vld [vmem:[#allocation8 + $0x28] sm:$0xff]
    %v371 = vld [vmem:[#allocation8 + $0x30] sm:$0xff]
    %v372 = vld [vmem:[#allocation8 + $0x38] sm:$0xff]
    %v373 = vld [vmem:[#allocation8 + $0x40] sm:$0xff]
    %v374 = vld [vmem:[#allocation8 + $0x48] sm:$0xff]
    %v375 = vld [vmem:[#allocation8 + $0x50] sm:$0xff]
    %v376 = vld [vmem:[#allocation8 + $0x58] sm:$0xff]
    %v377 = vld [vmem:[#allocation8 + $0x60] sm:$0xff]
    %v378 = vld [vmem:[#allocation8 + $0x68] sm:$0xff]
    %v379 = vld [vmem:[#allocation8 + $0x70] sm:$0xff]
    %v380 = vld [vmem:[#allocation8 + $0x78] sm:$0xff]
    %v381 = vld [vmem:[%s10] sm:$0x1]
    %v383 = vlaneseq
    %v384 = vshrl.u32 %v383, 7
    %v385 = vsub.s32 0, %v384
    %v386 = vrot.slane %v381, %v385
    %388 = vmatprep.subr.mxu0 0.0
    %389 = vmatpush1.msra.mxu0 %v365
    %390 = vmatprep.subr.mxu0 0.0
    %391 = vmatpush1.msra.mxu0 %v366
    %392 = vmatprep.subr.mxu0 0.0
    %393 = vmatpush1.msra.mxu0 %v367
    %394 = vmatprep.subr.mxu0 0.0
    %395 = vmatpush1.msra.mxu0 %v368
    %396 = vmatprep.subr.mxu0 0.0
    %397 = vmatpush1.msra.mxu0 %v369
    %398 = vmatprep.subr.mxu0 0.0
    %399 = vmatpush1.msra.mxu0 %v370
    %400 = vmatprep.subr.mxu0 0.0
    %401 = vmatpush1.msra.mxu0 %v371
    %402 = vmatprep.subr.mxu0 0.0
    %403 = vmatpush1.msra.mxu0 %v372
    %404 = vmatprep.subr.mxu0 0.0
    %405 = vmatpush1.msra.mxu0 %v373
    %406 = vmatprep.subr.mxu0 0.0
    %407 = vmatpush1.msra.mxu0 %v374
    %408 = vmatprep.subr.mxu0 0.0
    %409 = vmatpush1.msra.mxu0 %v375
    %410 = vmatprep.subr.mxu0 0.0
    %411 = vmatpush1.msra.mxu0 %v376
    %412 = vmatprep.subr.mxu0 0.0
    %413 = vmatpush1.msra.mxu0 %v377
    %414 = vmatprep.subr.mxu0 0.0
    %415 = vmatpush1.msra.mxu0 %v378
    %416 = vmatprep.subr.mxu0 0.0
    %417 = vmatpush1.msra.mxu0 %v379
    %418 = vmatprep.subr.mxu0 0.0
    %419 = vmatpush1.msra.mxu0 %v380
    %420 = vmatprep.subr.mxu0 0.0
    %421 = vmatpush1.msra.mxu0 0.0
    %422 = vmatprep.subr.mxu0 0.0
    %423 = vmatpush1.msra.mxu0 0.0
    %424 = vmatprep.subr.mxu0 0.0
    %425 = vmatpush1.msra.mxu0 0.0
    %426 = vmatprep.subr.mxu0 0.0
    %427 = vmatpush1.msra.mxu0 0.0
    %428 = vmatprep.subr.mxu0 0.0
    %429 = vmatpush1.msra.mxu0 0.0
    %430 = vmatprep.subr.mxu0 0.0
    %431 = vmatpush1.msra.mxu0 0.0
    %432 = vmatprep.subr.mxu0 0.0
    %433 = vmatpush1.msra.mxu0 0.0
    %434 = vmatprep.subr.mxu0 0.0
    %435 = vmatpush1.msra.mxu0 0.0
    %436 = vmatprep.subr.mxu0 0.0
    %437 = vmatpush1.msra.mxu0 0.0
    %438 = vmatprep.subr.mxu0 0.0
    %439 = vmatpush1.msra.mxu0 0.0
    %440 = vmatprep.subr.mxu0 0.0
    %441 = vmatpush1.msra.mxu0 0.0
    %442 = vmatprep.subr.mxu0 0.0
    %443 = vmatpush1.msra.mxu0 0.0
    %444 = vmatprep.subr.mxu0 0.0
    %445 = vmatpush1.msra.mxu0 0.0
    %446 = vmatprep.subr.mxu0 0.0
    %447 = vmatpush1.msra.mxu0 0.0
    %448 = vmatprep.subr.mxu0 0.0
    %449 = vmatpush1.msra.mxu0 0.0
    %450 = vmatprep.subr.mxu0 0.0
    %451 = vmatpush1.msra.mxu0 0.0
    %452 = vmatprep.mubr.f32.mxu0 0.0
    %453 = vmatmul.mubr.f32.gmra.mrb[0].mxu0 %v364
    %v454 = vpop.f32.mrb[0].mxu0
    %v455 = vadd.f32 %v386, %v454
    %v456 = vpop.f32.mrb[0].mxu0
    %457 = vdwg.mxu0
    %v458 = vrot.slane %v455, 4
    %v459 = vadd.f32 %v455, %v458
    %v460 = vrot.slane %v459, 2
    %v461 = vadd.f32 %v459, %v460
    %v462 = vrot.slane %v461, 1
    %v463 = vadd.f32 %v461, %v462
    %v464 = vmul.f32 %v463, 0.125
    %v465 = vmul.f32 %v455, %v455
    %v466 = vrot.slane %v465, 4
    %v467 = vadd.f32 %v465, %v466
    %v468 = vrot.slane %v467, 2
    %v469 = vadd.f32 %v467, %v468
    %v470 = vrot.slane %v469, 1
    %v471 = vadd.f32 %v469, %v470
    %v472 = vmul.f32 %v471, 0.125
    %v473 = vmul.f32 %v464, %v464
    %v474 = vsub.f32 %v472, %v473
    %v475 = vmax.f32 %v474, 0.0
    %v476 = vld [vmem:[%s11] sm:$0x1]
    %v477 = vadd.f32 %v475, 1e-05
    %v478 = vrsqrt.pop %v477
    %v479 = vmul.f32 %v476, %v478
    %v480 = vld [vmem:[%s12] sm:$0x1]
    %v481 = vmul.f32 %v464, %v479
    %v482 = vsub.f32 %v480, %v481
    %v484 = vlaneseq
    %v485 = vshrl.u32 %v484, 7
    %v486 = vsub.s32 0, %v485
    %v487 = vrot.slane %v479, %v486
    %v489 = vmul.f32 %v455, %v487
    %v491 = vlaneseq
    %v492 = vshrl.u32 %v491, 7
    %v493 = vsub.s32 0, %v492
    %v494 = vrot.slane %v482, %v493
    %v496 = vadd.f32 %v489, %v494
    %v497 = vmax.f32 %v496, 0.0
    %498 = vst [vmem:[#allocation10] sm:$0xff] %v497
    // Predicated region
    $region70: #{tpu_custom_call.1} parent=1 // pred_check
      _
    $region71: #{tpu_custom_call.1} parent=1 // pred_check_branch
      %500 = sbr.rel (0) target = $region73
    $region72: #{tpu_custom_call.1} parent=1 // pred_region
      %s502 = ssub.s32 128, 128
      %503 = vsyncadd [#allocation4], %s502
      %s505 = sshll.u32 [#allocation10], 4
      %s506 = int_to_ptr.vmem [resolvable:$true] %s505
      %508 = dma.vmem_to_hbm [thread:$0]  %s506, 128, %s13, [#allocation4]
    $region73: #{tpu_custom_call.1} parent=1 // pred_fallthru
      _
    // Predicated region
    $region74: #{tpu_custom_call.1} parent=1 // pred_check
      _
    $region75: #{tpu_custom_call.1} parent=1 // pred_check_branch
      %510 = sbr.rel (0) target = $region77
    $region76: #{tpu_custom_call.1} parent=1 // pred_region
      %511 = dma.done [#allocation4], 128
    $region77: #{tpu_custom_call.1} parent=1 // pred_fallthru
      _
    %512 = vsyncpa [#allocation3], 1
    %513 = vsyncpa [#allocation6], 1
    %514 = vsyncpa [#allocation9], 1
    %515 = vsyncpa [#allocation4], 1

</llo_original>
